<compile_context>
chip_gen: v5e
topology: v5e:2x2
jax: 0.10.0
libtpu: 0.0.40
codegen_flags: <defaults>
</compile_context>

<pallas_src>
import jax
import jax.numpy as jnp
from jax.experimental import pallas as pl
from jax.experimental.pallas import tpu as pltpu

_F32_MAX = float(jnp.finfo(jnp.float32).max)


def _cdiv(a, b):
    return -(-a // b)


def _round_up(a, b):
    return _cdiv(a, b) * b


def _nan_to_num(x):
    # torch.nan_to_num defaults: NaN -> 0, +inf -> f32 max, -inf -> f32 lowest.
    x = jnp.where(jnp.isnan(x), 0.0, x)
    x = jnp.where(x == jnp.inf, _F32_MAX, x)
    x = jnp.where(x == -jnp.inf, -_F32_MAX, x)
    return x


def _betti_loss_kernel(xb_ref, xd_ref, th_ref, out_ref):
    # out_ref: (8, TN) f32 partial-sum accumulator, resident across the
    # "arbitrary" reduction axis (grid axis 1) for each parallel shard.
    @pl.when(pl.program_id(1) == 0)
    def _():
        out_ref[...] = jnp.zeros_like(out_ref)

    xb = _nan_to_num(xb_ref[...])
    xd = _nan_to_num(xd_ref[...])
    d = xd - xb
    d2 = d * d

    # Prefix mask rebuilt from a lane iota and the per-(row, chunk) threshold:
    # position i of diagram row r is "in prefix" iff i < bY[r].
    lane = jax.lax.broadcasted_iota(jnp.int32, d2.shape, dimension=2)
    in_prefix = lane < th_ref[...]                        # (G,8,TN) < (G,8,1)

    contrib = jnp.where(in_prefix, 1.0 - d2, d2)          # (G, 8, TN)

    # Reduce the G slabs with pure vreg adds (no cross-lane reduce, no masked
    # scalar store in the steady-state loop).  G is static -> unrolled adds.
    acc = contrib[0]
    for g in range(1, contrib.shape[0]):
        acc = acc + contrib[g]
    out_ref[...] += acc


def _repack(x2d, rows_pad, C, TN, N):
    """[R, N] -> lane-pad to C*TN -> [R*C, TN] -> row-pad -> (slabs, 8, TN)."""
    R = x2d.shape[0]
    x = jnp.pad(x2d, ((0, 0), (0, C * TN - N)))           # pad 0 -> d2 = 0
    x = x.reshape(R * C, TN)
    x = jnp.pad(x, ((0, rows_pad - R * C), (0, 0)))
    return x.reshape(rows_pad // 8, 8, TN)


def betti_loss(dgms_Xb, dgms_Xd, dgms_Yb, dgms_Yd=None, *, b_y=None,
               lane_tile=1024, block_slabs=32, num_parallel=2):
    """Pallas implementation of BettiLossFunction.forward (scalar loss).

    b_y: optional int array [B, D] (or [B*D]) of finite-bar counts of the Y
         diagrams.  If omitted it is computed with a tiny XLA reduce over
         dgms_Yb (exact drop_inf semantics; the kernel itself never streams Yb).
    lane_tile:   lane-tile width (rounded down to a multiple of 128).
    block_slabs: 8-row slabs per block; 32 * 8 * 1024 f32 = 1 MiB per input
                 block, so 2 streams x 2 pipeline buffers + elementwise
                 intermediates stay well under v7x's 32 MiB scoped VMEM.
    num_parallel: leading "parallel" grid axis size (2 feeds both v7x
                 TensorCores; harmless on single-core v5e/v6e).
    """
    del dgms_Yd  # unused by the forward pass (only bar counts of Yb enter)
    B, D, N = dgms_Xb.shape
    R = B * D

    xb = dgms_Xb.reshape(R, N).astype(jnp.float32)
    xd = dgms_Xd.reshape(R, N).astype(jnp.float32)

    if b_y is None:
        # drop_inf bar count per (batch, homology dim): tiny pure-JAX reduce.
        b_y = jnp.sum(jnp.isfinite(dgms_Yb.reshape(R, -1)), axis=-1)
    b_y = jnp.clip(b_y.reshape(R).astype(jnp.int32), 0, N)

    # --- repacked streaming layout ---------------------------------------
    TN = max(128, (int(lane_tile) // 128) * 128)          # lane tile
    TN = min(TN, _round_up(N, 128))
    C = _cdiv(N, TN)                                       # chunks per row
    rows2 = R * C                                          # repacked 2-D rows

    P = max(1, int(num_parallel))
    G = max(1, min(int(block_slabs), _cdiv(rows2, P * 8)))  # slabs per block
    n_j = _cdiv(rows2, P * 8 * G)                          # reduction length
    rows_pad = P * n_j * 8 * G

    xb3 = _repack(xb, rows_pad, C, TN, N)
    xd3 = _repack(xd, rows_pad, C, TN, N)

    # Per-(row, chunk) prefix threshold: chunk k of row r keeps lanes
    # < clip(bY[r] - k*TN, 0, TN).  Padding rows get 0 (never in prefix),
    # and padded data is 0 -> padding contributes exactly 0 to the loss.
    th = jnp.clip(b_y[:, None]
                  - jnp.arange(C, dtype=jnp.int32)[None, :] * TN, 0, TN)
    th = jnp.pad(th.reshape(rows2), (0, rows_pad - rows2))
    th3 = th.reshape(rows_pad // 8, 8, 1)

    data_spec = pl.BlockSpec((G, 8, TN), lambda p, j: (p * n_j + j, 0, 0))
    th_spec = pl.BlockSpec((G, 8, 1), lambda p, j: (p * n_j + j, 0, 0))
    out_spec = pl.BlockSpec((8, TN), lambda p, j: (p, 0))

    n_elem = rows_pad * TN
    cost = pl.CostEstimate(
        flops=10 * n_elem, transcendentals=0,
        bytes_accessed=2 * n_elem * 4 + rows_pad * 4 + P * 8 * TN * 4)

    partial = pl.pallas_call(
        _betti_loss_kernel,
        out_shape=jax.ShapeDtypeStruct((P * 8, TN), jnp.float32),
        grid=(P, n_j),
        in_specs=[data_spec, data_spec, th_spec],
        out_specs=out_spec,
        compiler_params=pltpu.CompilerParams(
            dimension_semantics=("parallel", "arbitrary")),
        cost_estimate=cost,
    )(xb3, xd3, th3)

    # Tiny (P*8, TN) partial-sum reduce; the heavy streaming stays in-kernel.
    return jnp.sum(partial)


def _reference_loss(dgms_Xb, dgms_Xd, dgms_Yb):
    """Pure-JAX reference mirroring the PyTorch forward exactly."""
    xb = jnp.nan_to_num(dgms_Xb)
    xd = jnp.nan_to_num(dgms_Xd)
    d2 = jnp.square(xd - xb)
    b_y = jnp.sum(jnp.isfinite(dgms_Yb).astype(jnp.int32), axis=-1,
                  keepdims=True)
    idx = jnp.arange(dgms_Xb.shape[-1])[None, None, :]
    return jnp.sum(jnp.where(idx < b_y, 1.0 - d2, d2))


if __name__ == "__main__":
    # Small, deterministic synthetic persistence diagrams.
    # maxdim = 1  ->  D = maxdim + 1 = 2 homology dimensions.
    B, D, N = 2, 2, 1024

    key = jax.random.PRNGKey(0)
    k1, k2, k3 = jax.random.split(key, 3)
    idx = jnp.arange(N)[None, None, :]

    # X diagrams: finite prefix, NaN padding.
    nX = jnp.array([[400, 240], [320, 160]], dtype=jnp.int32)
    mask_x = idx < nX[:, :, None]
    Xb = jax.random.uniform(k1, (B, D, N), dtype=jnp.float32)
    Xd = Xb + 0.5 * jax.random.uniform(k2, (B, D, N), dtype=jnp.float32)
    Xb = jnp.where(mask_x, Xb, jnp.nan)
    Xd = jnp.where(mask_x, Xd, jnp.nan)
    # One non-co-located NaN (birth only) to exercise the separate nan_to_num.
    Xb = Xb.at[0, 0, 10].set(jnp.nan)

    # Y birth diagrams: finite bars, inf padding, plus one interspersed inf
    # (essential bar) inside the finite region -> exact drop_inf counting.
    bY = jnp.array([[80, 32], [120, 20]], dtype=jnp.int32)
    mask_y = idx < bY[:, :, None]
    Yb = jax.random.uniform(k3, (B, D, N), dtype=jnp.float32)
    Yb = jnp.where(mask_y, Yb, jnp.inf)
    Yb = Yb.at[0, 0, 5].set(jnp.inf)
    Yd = jnp.where(mask_y, Yb + 0.1, jnp.inf)   # unused by the forward

    ref = _reference_loss(Xb, Xd, Yb)

    # Default config: one large packed block per TensorCore shard.
    l1 = jax.block_until_ready(betti_loss(Xb, Xd, Yb, Yd))
    # Small tiles: exercises the (parallel, arbitrary) grid + accumulator.
    l2 = jax.block_until_ready(
        betti_loss(Xb, Xd, Yb, Yd, lane_tile=128, block_slabs=1,
                   num_parallel=2))
    # Caller-supplied bar counts (Yb never read by the loss path) + G > 1.
    b_y = jnp.sum(jnp.isfinite(Yb), axis=-1).astype(jnp.int32)
    l3 = jax.block_until_ready(
        betti_loss(Xb, Xd, Yb, Yd, b_y=b_y, lane_tile=256, num_parallel=1))

    for got in (l1, l2, l3):
        assert jnp.allclose(got, ref, rtol=1e-4, atol=1e-3), (got, ref)
    print("KERNEL_OK")
</pallas_src>

<mosaic_0001>
module attributes {stable_mosaic.version = 11 : i64} {
  func.func @_betti_loss_kernel(%arg0: i32, %arg1: i32, %arg2: memref<1x8x1024xf32, #tpu.memory_space<vmem>>, %arg3: memref<1x8x1024xf32, #tpu.memory_space<vmem>>, %arg4: memref<1x8x1xi32, #tpu.memory_space<vmem>>, %arg5: memref<8x1024xf32, #tpu.memory_space<vmem>>) attributes {dimension_semantics = [#tpu.dimension_semantics<parallel>, #tpu.dimension_semantics<arbitrary>], iteration_bounds = array<i64: 2, 1>, scalar_prefetch = 0 : i64, scratch_operands = 0 : i64, tpu.core_type = #tpu.core_type<tc>, window_params = [{transform_indices = @transform_0, window_bounds = array<i64: 1, 8, 1024>}, {transform_indices = @transform_1, window_bounds = array<i64: 1, 8, 1024>}, {transform_indices = @transform_2, window_bounds = array<i64: 1, 8, 1>}, {transform_indices = @transform_3, window_bounds = array<i64: 8, 1024>}]} {
    %c0_i32 = arith.constant 0 : i32
    %0 = arith.cmpi eq, %arg1, %c0_i32 : i32
    %1 = arith.extui %0 : i1 to i32
    %c0_i32_0 = arith.constant 0 : i32
    %2 = arith.cmpi ne, %1, %c0_i32_0 : i32
    scf.if %2 {
      %cst_23 = arith.constant 0.000000e+00 : f32
      %40 = vector.broadcast %cst_23 : f32 to vector<8x1024xf32>
      %c0_24 = arith.constant 0 : index
      %c0_25 = arith.constant 0 : index
      %41 = vector.load %arg5[%c0_24, %c0_25] : memref<8x1024xf32, #tpu.memory_space<vmem>>, vector<8x1024xf32>
      tpu.vector_store %arg5[%c0_24, %c0_25], %40 {strides = array<i32>} : memref<8x1024xf32, #tpu.memory_space<vmem>>, vector<8x1024xf32>,
    } else {
    }
    %c0 = arith.constant 0 : index
    %c0_1 = arith.constant 0 : index
    %c0_2 = arith.constant 0 : index
    %3 = vector.load %arg2[%c0, %c0_1, %c0_2] : memref<1x8x1024xf32, #tpu.memory_space<vmem>>, vector<1x8x1024xf32>
    %4 = arith.cmpf one, %3, %3 : vector<1x8x1024xf32>
    %cst = arith.constant 0.000000e+00 : f32
    %5 = vector.broadcast %cst : f32 to vector<1x8x1024xf32>
    %6 = arith.select %4, %5, %3 : vector<1x8x1024xi1>, vector<1x8x1024xf32>
    %cst_3 = arith.constant 0x7F800000 : f32
    %7 = vector.broadcast %cst_3 : f32 to vector<1x8x1024xf32>
    %8 = arith.cmpf oeq, %6, %7 : vector<1x8x1024xf32>
    %cst_4 = arith.constant 3.40282347E+38 : f32
    %9 = vector.broadcast %cst_4 : f32 to vector<1x8x1024xf32>
    %10 = arith.select %8, %9, %6 : vector<1x8x1024xi1>, vector<1x8x1024xf32>
    %cst_5 = arith.constant 0xFF800000 : f32
    %11 = vector.broadcast %cst_5 : f32 to vector<1x8x1024xf32>
    %12 = arith.cmpf oeq, %10, %11 : vector<1x8x1024xf32>
    %cst_6 = arith.constant -3.40282347E+38 : f32
    %13 = vector.broadcast %cst_6 : f32 to vector<1x8x1024xf32>
    %14 = arith.select %12, %13, %10 : vector<1x8x1024xi1>, vector<1x8x1024xf32>
    %c0_7 = arith.constant 0 : index
    %c0_8 = arith.constant 0 : index
    %c0_9 = arith.constant 0 : index
    %15 = vector.load %arg3[%c0_7, %c0_8, %c0_9] : memref<1x8x1024xf32, #tpu.memory_space<vmem>>, vector<1x8x1024xf32>
    %16 = arith.cmpf one, %15, %15 : vector<1x8x1024xf32>
    %cst_10 = arith.constant 0.000000e+00 : f32
    %17 = vector.broadcast %cst_10 : f32 to vector<1x8x1024xf32>
    %18 = arith.select %16, %17, %15 : vector<1x8x1024xi1>, vector<1x8x1024xf32>
    %cst_11 = arith.constant 0x7F800000 : f32
    %19 = vector.broadcast %cst_11 : f32 to vector<1x8x1024xf32>
    %20 = arith.cmpf oeq, %18, %19 : vector<1x8x1024xf32>
    %cst_12 = arith.constant 3.40282347E+38 : f32
    %21 = vector.broadcast %cst_12 : f32 to vector<1x8x1024xf32>
    %22 = arith.select %20, %21, %18 : vector<1x8x1024xi1>, vector<1x8x1024xf32>
    %cst_13 = arith.constant 0xFF800000 : f32
    %23 = vector.broadcast %cst_13 : f32 to vector<1x8x1024xf32>
    %24 = arith.cmpf oeq, %22, %23 : vector<1x8x1024xf32>
    %cst_14 = arith.constant -3.40282347E+38 : f32
    %25 = vector.broadcast %cst_14 : f32 to vector<1x8x1024xf32>
    %26 = arith.select %24, %25, %22 : vector<1x8x1024xi1>, vector<1x8x1024xf32>
    %27 = arith.subf %26, %14 : vector<1x8x1024xf32>
    %28 = arith.mulf %27, %27 : vector<1x8x1024xf32>
    %29 = tpu.iota {dimensions = array<i32: 2>} : vector<1x8x1024xi32>
    %c0_15 = arith.constant 0 : index
    %c0_16 = arith.constant 0 : index
    %c0_17 = arith.constant 0 : index
    %30 = vector.load %arg4[%c0_15, %c0_16, %c0_17] : memref<1x8x1xi32, #tpu.memory_space<vmem>>, vector<1x8x1xi32>
    %31 = vector.broadcast %30 : vector<1x8x1xi32> to vector<1x8x1024xi32>
    %32 = arith.cmpi slt, %29, %31 : vector<1x8x1024xi32>
    %cst_18 = arith.constant 1.000000e+00 : f32
    %33 = vector.broadcast %cst_18 : f32 to vector<1x8x1024xf32>
    %34 = arith.subf %33, %28 : vector<1x8x1024xf32>
    %35 = arith.select %32, %34, %28 : vector<1x8x1024xi1>, vector<1x8x1024xf32>
    %36 = vector.shape_cast %35 : vector<1x8x1024xf32> to vector<8x1024xf32>
    %c0_19 = arith.constant 0 : index
    %c0_20 = arith.constant 0 : index
    %37 = vector.load %arg5[%c0_19, %c0_20] : memref<8x1024xf32, #tpu.memory_space<vmem>>, vector<8x1024xf32>
    %38 = arith.addf %37, %36 : vector<8x1024xf32>
    %c0_21 = arith.constant 0 : index
    %c0_22 = arith.constant 0 : index
    %39 = vector.load %arg5[%c0_21, %c0_22] : memref<8x1024xf32, #tpu.memory_space<vmem>>, vector<8x1024xf32>
    tpu.vector_store %arg5[%c0_21, %c0_22], %38 {strides = array<i32>} : memref<8x1024xf32, #tpu.memory_space<vmem>>, vector<8x1024xf32>,
    return
  }
  func.func @transform_0(%arg0: i32, %arg1: i32) -> (i32, i32, i32) {
    %c1_i32 = arith.constant 1 : i32
    %0 = arith.muli %arg0, %c1_i32 : i32
    %1 = arith.addi %0, %arg1 : i32
    %c0_i32 = arith.constant 0 : i32
    %c0_i32_0 = arith.constant 0 : i32
    %c0_i32_1 = arith.constant 0 : i32
    return %1, %c0_i32, %c0_i32_0 : i32, i32, i32
  }
  func.func @transform_1(%arg0: i32, %arg1: i32) -> (i32, i32, i32) {
    %c1_i32 = arith.constant 1 : i32
    %0 = arith.muli %arg0, %c1_i32 : i32
    %1 = arith.addi %0, %arg1 : i32
    %c0_i32 = arith.constant 0 : i32
    %c0_i32_0 = arith.constant 0 : i32
    %c0_i32_1 = arith.constant 0 : i32
    return %1, %c0_i32, %c0_i32_0 : i32, i32, i32
  }
  func.func @transform_2(%arg0: i32, %arg1: i32) -> (i32, i32, i32) {
    %c1_i32 = arith.constant 1 : i32
    %0 = arith.muli %arg0, %c1_i32 : i32
    %1 = arith.addi %0, %arg1 : i32
    %c0_i32 = arith.constant 0 : i32
    %c0_i32_0 = arith.constant 0 : i32
    %c0_i32_1 = arith.constant 0 : i32
    return %1, %c0_i32, %c0_i32_0 : i32, i32, i32
  }
  func.func @transform_3(%arg0: i32, %arg1: i32) -> (i32, i32) {
    %c0_i32 = arith.constant 0 : i32
    %c0_i32_0 = arith.constant 0 : i32
    return %arg0, %c0_i32 : i32, i32
  }
}

</mosaic_0001>

<llo_original>
// kernel: tpu_custom_call.1
$region0: #{tpu_custom_call.1}
  #allocation0 [shape = 'u32[]', space=smem, size = 0x4, offset = 0x4, fixed_abs, tag = 'smem constant byte address 0x4 - core index']
  #allocation1 [shape = 'u32[72,128]{1,0:T(1,128)}', space=vmem, size = 0x9000, scoped, tag = 'internal scratch']
  %s0 = inlined_call_operand.hbm [shape: f32[2,8,1024], index: 0, kind: input, shape index: {}]
  %s1 = inlined_call_operand.hbm [shape: f32[2,8,1024], index: 1, kind: input, shape index: {}]
  %s2 = inlined_call_operand.vmem [shape: s32[2,8,1], index: 2, kind: input, shape index: {}]
  %s3 = inlined_call_operand.hbm [shape: f32[16,1024], index: 3, kind: output, shape index: {}]
  %s4 = sld [smem:[#allocation0]]
  $region57: #{tpu_custom_call.1} parent=0
    _
  %s6 = ssub.s32 1, %s4
  %s7 = scalar_select 0, %s6, %s4
  $region1: #{tpu_custom_call.1} parent=0
    #allocation2 [shape = 'u8[65536]{0}', space=vmem, size = 0x10000, scoped, tag = 'input window, operand 0']
    #allocation3 [shape = 's32[2]{0}', space=sflag, size = 0x8, scoped, tag = 'scoped memory for tpu_custom_call.1']
    #allocation4 [shape = 's32[2]{0}', space=sflag, size = 0x8, scoped, tag = 'scoped memory for tpu_custom_call.1']
    #allocation5 [shape = 'u8[65536]{0}', space=vmem, size = 0x10000, scoped, tag = 'input window, operand 1']
    #allocation6 [shape = 's32[2]{0}', space=sflag, size = 0x8, scoped, tag = 'scoped memory for tpu_custom_call.1']
    #allocation7 [shape = 'u8[65536]{0}', space=vmem, size = 0x10000, scoped, tag = 'output window, operand 0']
    %8 = vsyncpa [#allocation3], 0
    %s9 = scalar_lea.sflag [#allocation3], 1
    %10 = vsyncpa %s9, 0
    %11 = vsyncpa [#allocation6], 0
    %s12 = scalar_lea.sflag [#allocation6], 1
    %13 = vsyncpa %s12, 0
    %14 = vsyncpa [#allocation4], 0
    %s15 = scalar_lea.sflag [#allocation4], 1
    %16 = vsyncpa %s15, 0
    loop: start=0, step=1, limit=4
    $region2: #{tpu_custom_call.1} parent=1 // loop_pre_header
      _
    $region3: #{tpu_custom_call.1} parent=1 // loop_header
      %s18 = sphi 0, %s22
      %p19 = scmp.ge.s32.totalorder %s18, 4
      %s25 = sphi 0, %s37
      %s26 = sphi 0, %s33
      %s27 = sphi 0, %s25
      %s28 = sphi 0, %s26
      %s29 = sphi 0, %s27
      %s30 = sphi 0, %s28
      %s42 = sphi 0, %s44
      %s45 = sphi 0, %s42
      %s46 = sphi 0, %s45
      %s62 = sphi 0, %s46
      %s70 = sphi 0, %s72
      %s73 = sphi 0, %s70
      %s74 = sphi 0, %s73
      %s90 = sphi 0, %s74
      %s98 = sphi 0, %s100
      %s101 = sphi 0, %s98
      %s102 = sphi 0, %s101
      %s118 = sphi 0, %s102
      %s124 = sphi 0, %s126
      %s127 = sphi 0, %s124
      %s128 = sphi 0, %s127
      %s144 = sphi 0, %s128
    $region4: #{tpu_custom_call.1} parent=1 // loop_header_branch
      %21 = sbr.rel (%p19) target = $region8
    $region5: #{tpu_custom_call.1} parent=1 // loop_body
      %s23 = ssub.s32 %s18, 1
      %s24 = ssub.s32 %s18, 2
      %s31 = sadd.s32 1, %s26
      %p32 = scmp.ge.s32.totalorder %s31, 1
      %s33 = scalar_select %p32, 0, %s31
      %s34 = sadd.s32 1, %s25
      %s35 = scalar_select %p32, %s34, %s25
      %p36 = scmp.ge.s32.totalorder %s35, 2
      %s37 = scalar_select %p36, 0, %s35
      %s38 = sadd.s32 %s25, %s26
      %s39 = sadd.s32 %s37, %s33
      %s40 = ssub.s32 %s38, %s39
      %p41 = scmp.eq.s32.totalorder %s40, 0
      %s43 = sadd.s32 %s42, 1
      %s44 = scalar_select %p41, %s42, %s43
      %p47 = pneg %p41
      %p48 = scmp.eq.s32.totalorder %s18, 1
      %p49 = por %p47, %p48
      %p50 = scmp.ne.s32.totalorder %s42, %s45
      %p51 = scmp.eq.s32.totalorder %s18, 0
      %p52 = por %p50, %p51
      %p53 = scmp.ne.s32.totalorder %s42, %s45
      %p54 = scmp.eq.s32.totalorder %s23, 1
      %p55 = por %p53, %p54
      %p56 = scmp.ne.s32.totalorder %s45, %s46
      %p57 = scmp.eq.s32.totalorder %s23, 0
      %p58 = por %p56, %p57
      %p59 = scmp.ne.s32.totalorder %s45, %s46
      %p60 = scmp.eq.s32.totalorder %s24, 1
      %p61 = por %p59, %p60
      %p63 = scmp.ne.s32.totalorder %s46, %s62
      %p64 = scmp.eq.s32.totalorder %s24, 0
      %p65 = por %p63, %p64
      %s66 = sadd.s32 %s25, %s26
      %s67 = sadd.s32 %s37, %s33
      %s68 = ssub.s32 %s66, %s67
      %p69 = scmp.eq.s32.totalorder %s68, 0
      %s71 = sadd.s32 %s70, 1
      %s72 = scalar_select %p69, %s70, %s71
      %p75 = pneg %p69
      %p76 = scmp.eq.s32.totalorder %s18, 1
      %p77 = por %p75, %p76
      %p78 = scmp.ne.s32.totalorder %s70, %s73
      %p79 = scmp.eq.s32.totalorder %s18, 0
      %p80 = por %p78, %p79
      %p81 = scmp.ne.s32.totalorder %s70, %s73
      %p82 = scmp.eq.s32.totalorder %s23, 1
      %p83 = por %p81, %p82
      %p84 = scmp.ne.s32.totalorder %s73, %s74
      %p85 = scmp.eq.s32.totalorder %s23, 0
      %p86 = por %p84, %p85
      %p87 = scmp.ne.s32.totalorder %s73, %s74
      %p88 = scmp.eq.s32.totalorder %s24, 1
      %p89 = por %p87, %p88
      %p91 = scmp.ne.s32.totalorder %s74, %s90
      %p92 = scmp.eq.s32.totalorder %s24, 0
      %p93 = por %p91, %p92
      %s94 = sadd.s32 %s25, %s26
      %s95 = sadd.s32 %s37, %s33
      %s96 = ssub.s32 %s94, %s95
      %p97 = scmp.eq.s32.totalorder %s96, 0
      %s99 = sadd.s32 %s98, 1
      %s100 = scalar_select %p97, %s98, %s99
      %p103 = pneg %p97
      %p104 = scmp.eq.s32.totalorder %s18, 1
      %p105 = por %p103, %p104
      %p106 = scmp.ne.s32.totalorder %s98, %s101
      %p107 = scmp.eq.s32.totalorder %s18, 0
      %p108 = por %p106, %p107
      %p109 = scmp.ne.s32.totalorder %s98, %s101
      %p110 = scmp.eq.s32.totalorder %s23, 1
      %p111 = por %p109, %p110
      %p112 = scmp.ne.s32.totalorder %s101, %s102
      %p113 = scmp.eq.s32.totalorder %s23, 0
      %p114 = por %p112, %p113
      %p115 = scmp.ne.s32.totalorder %s101, %s102
      %p116 = scmp.eq.s32.totalorder %s24, 1
      %p117 = por %p115, %p116
      %p119 = scmp.ne.s32.totalorder %s102, %s118
      %p120 = scmp.eq.s32.totalorder %s24, 0
      %p121 = por %p119, %p120
      %s122 = ssub.s32 %s25, %s37
      %p123 = scmp.eq.s32.totalorder %s122, 0
      %s125 = sadd.s32 %s124, 1
      %s126 = scalar_select %p123, %s124, %s125
      %p129 = pneg %p123
      %p130 = scmp.eq.s32.totalorder %s18, 1
      %p131 = por %p129, %p130
      %p132 = scmp.ne.s32.totalorder %s124, %s127
      %p133 = scmp.eq.s32.totalorder %s18, 0
      %p134 = por %p132, %p133
      %p135 = scmp.ne.s32.totalorder %s124, %s127
      %p136 = scmp.eq.s32.totalorder %s23, 1
      %p137 = por %p135, %p136
      %p138 = scmp.ne.s32.totalorder %s127, %s128
      %p139 = scmp.eq.s32.totalorder %s23, 0
      %p140 = por %p138, %p139
      %p141 = scmp.ne.s32.totalorder %s127, %s128
      %p142 = scmp.eq.s32.totalorder %s24, 1
      %p143 = por %p141, %p142
      %p145 = scmp.ne.s32.totalorder %s128, %s144
      %p146 = scmp.eq.s32.totalorder %s24, 0
      %p147 = por %p145, %p146
      %p148 = scmp.le.s32.totalorder 1, %s18
      %p149 = scmp.lt.s32.totalorder %s18, 3
      %p150 = pnand %p148, %p149
      %p151 = pneg %p150
      // Predicated region
      $region9: #{tpu_custom_call.1} parent=5 // pred_check
        _
      $region10: #{tpu_custom_call.1} parent=5 // pred_check_branch
        %153 = sbr.rel (%p150) target = $region12
      $region11: #{tpu_custom_call.1} parent=5 // pred_region
        %s154 = ssub.s32 %s18, 1
      $region12: #{tpu_custom_call.1} parent=5 // pred_fallthru
        _
      %p155 = scmp.lt.s32.totalorder %s18, 2
      // Predicated region
      $region13: #{tpu_custom_call.1} parent=5 // pred_check
        %p156 = pneg %p155
      $region14: #{tpu_custom_call.1} parent=5 // pred_check_branch
        %158 = sbr.rel (%p156) target = $region16
      $region15: #{tpu_custom_call.1} parent=5 // pred_region
        // Predicated region
        $region17: #{tpu_custom_call.1} parent=15 // pred_check
          %p159 = pneg %p52
        $region18: #{tpu_custom_call.1} parent=15 // pred_check_branch
          %161 = sbr.rel (%p159) target = $region20
        $region19: #{tpu_custom_call.1} parent=15 // pred_region
          %s162 = sand.u32 %s42, 1
          %s163 = scalar_lea.sflag [#allocation3], %s162
          %s164 = sand.u32 %s42, 1
          %s165 = smul.addr %s164, 64
          %s166 = scalar_lea.vmem [#allocation2], %s165
          %s167 = sadd.s32 %s25, %s26
          %169 = vsyncadd %s163, 0
          %s170 = smul.addr %s167, 8
          %s171 = smul.addr %s170, 8
          %s172 = scalar_lea.hbm %s0, %s171
          %s174 = sshll.u32 %s172, 4
          %s175 = int_to_ptr.hbm [resolvable:$true] %s174
          %s176 = sshll.u32 %s166, 4
          %s177 = int_to_ptr.vmem [resolvable:$true] %s176
          %179 = dma.hbm_to_vmem [thread:$0]  %s175, 1024, %s177, %s163
        $region20: #{tpu_custom_call.1} parent=15 // pred_fallthru
          _
        // Predicated region
        $region21: #{tpu_custom_call.1} parent=15 // pred_check
          %p180 = pneg %p80
        $region22: #{tpu_custom_call.1} parent=15 // pred_check_branch
          %182 = sbr.rel (%p180) target = $region24
        $region23: #{tpu_custom_call.1} parent=15 // pred_region
          %s183 = sand.u32 %s70, 1
          %s184 = scalar_lea.sflag [#allocation6], %s183
          %s185 = sand.u32 %s70, 1
          %s186 = smul.addr %s185, 64
          %s187 = scalar_lea.vmem [#allocation5], %s186
          %s188 = sadd.s32 %s25, %s26
          %190 = vsyncadd %s184, 0
          %s191 = smul.addr %s188, 8
          %s192 = smul.addr %s191, 8
          %s193 = scalar_lea.hbm %s1, %s192
          %s195 = sshll.u32 %s193, 4
          %s196 = int_to_ptr.hbm [resolvable:$true] %s195
          %s197 = sshll.u32 %s187, 4
          %s198 = int_to_ptr.vmem [resolvable:$true] %s197
          %200 = dma.hbm_to_vmem [thread:$0]  %s196, 1024, %s198, %s184
        $region24: #{tpu_custom_call.1} parent=15 // pred_fallthru
          _
        // Predicated region
        $region25: #{tpu_custom_call.1} parent=15 // pred_check
          %p201 = pneg %p108
        $region26: #{tpu_custom_call.1} parent=15 // pred_check_branch
          %203 = sbr.rel (%p201) target = $region28
        $region27: #{tpu_custom_call.1} parent=15 // pred_region
          %s204 = sadd.s32 %s25, %s26
          %p205 = scmp.lt.s32.totalorder %s204, 1
          %s206 = scalar_select %p205, %s204, 1
          %s207 = smul.addr %s206, 8
          %s208 = scalar_lea.vmem %s2, %s207
          %s209 = sadd.s32 %s25, %s26
        $region28: #{tpu_custom_call.1} parent=15 // pred_fallthru
          _
      $region16: #{tpu_custom_call.1} parent=5 // pred_fallthru
        _
      %p210 = scmp.le.s32.totalorder 1, %s18
      %p211 = scmp.lt.s32.totalorder %s18, 3
      %p212 = pnand %p210, %p211
      %p213 = pneg %p212
      // Predicated region
      $region29: #{tpu_custom_call.1} parent=5 // pred_check
        _
      $region30: #{tpu_custom_call.1} parent=5 // pred_check_branch
        %215 = sbr.rel (%p212) target = $region32
      $region31: #{tpu_custom_call.1} parent=5 // pred_region
        %s216 = ssub.s32 %s18, 1
        %s217 = sand.u32 %s45, 1
        %s218 = scalar_lea.sflag [#allocation3], %s217
        %s219 = sand.u32 %s45, 1
        %s220 = smul.addr %s219, 64
        %s221 = scalar_lea.vmem [#allocation2], %s220
        // Predicated region
        $region33: #{tpu_custom_call.1} parent=31 // pred_check
          %p222 = pneg %p58
        $region34: #{tpu_custom_call.1} parent=31 // pred_check_branch
          %224 = sbr.rel (%p222) target = $region36
        $region35: #{tpu_custom_call.1} parent=31 // pred_region
          %226 = dma.done %s218, 1024
        $region36: #{tpu_custom_call.1} parent=31 // pred_fallthru
          _
        %s227 = sand.u32 %s73, 1
        %s228 = scalar_lea.sflag [#allocation6], %s227
        %s229 = sand.u32 %s73, 1
        %s230 = smul.addr %s229, 64
        %s231 = scalar_lea.vmem [#allocation5], %s230
        // Predicated region
        $region37: #{tpu_custom_call.1} parent=31 // pred_check
          %p232 = pneg %p86
        $region38: #{tpu_custom_call.1} parent=31 // pred_check_branch
          %234 = sbr.rel (%p232) target = $region40
        $region39: #{tpu_custom_call.1} parent=31 // pred_region
          %236 = dma.done %s228, 1024
        $region40: #{tpu_custom_call.1} parent=31 // pred_fallthru
          _
        %s237 = sand.u32 %s45, 1
        %s238 = scalar_lea.sflag [#allocation3], %s237
        %s239 = sand.u32 %s45, 1
        %s240 = smul.addr %s239, 64
        %s241 = scalar_lea.vmem [#allocation2], %s240
        %p242 = pneg %p58
        %p243 = pneg %p55
        %s244 = sand.u32 %s73, 1
        %s245 = scalar_lea.sflag [#allocation6], %s244
        %s246 = sand.u32 %s73, 1
        %s247 = smul.addr %s246, 64
        %s248 = scalar_lea.vmem [#allocation5], %s247
        %p249 = pneg %p86
        %p250 = pneg %p83
        %s251 = sadd.s32 %s27, %s28
        %p252 = scmp.lt.s32.totalorder %s251, 1
        %s253 = scalar_select %p252, %s251, 1
        %s254 = smul.addr %s253, 8
        %s255 = scalar_lea.vmem %s2, %s254
        %p256 = pneg %p114
        %p257 = pneg %p111
        %p258 = pneg %p140
        %p259 = pneg %p137
        %s260 = sand.u32 %s127, 1
        %s261 = scalar_lea.sflag [#allocation4], %s260
        %s262 = sand.u32 %s127, 1
        %s263 = smul.addr %s262, 64
        %s264 = scalar_lea.vmem [#allocation7], %s263
        %s265 = sadd.s32 %s27, %s28
        %s266 = sadd.s32 %s27, %s28
        %s267 = sadd.s32 %s27, %s28
        %p268 = scmp.lt.s32.totalorder %s267, 1
        %s269 = scalar_select %p268, %s267, 1
        %s270 = smul.addr %s269, 8
        %s271 = scalar_lea.vmem %s2, %s270
        %s272 = sadd.s32 %s27, %s28
        %p273 = scmp.eq.s32.totalorder %s28, 0
        // Predicated region
        $region41: #{tpu_custom_call.1} parent=31 // pred_check
          %p274 = pneg %p273
        $region42: #{tpu_custom_call.1} parent=31 // pred_check_branch
          %276 = sbr.rel (%p274) target = $region44
        $region43: #{tpu_custom_call.1} parent=31 // pred_region
          %277 = vst [vmem:[%s264] sm:$0xff] 0.0
          %278 = vst [vmem:[%s264 + $0x8] sm:$0xff] 0.0
          %279 = vst [vmem:[%s264 + $0x10] sm:$0xff] 0.0
          %280 = vst [vmem:[%s264 + $0x18] sm:$0xff] 0.0
          %281 = vst [vmem:[%s264 + $0x20] sm:$0xff] 0.0
          %282 = vst [vmem:[%s264 + $0x28] sm:$0xff] 0.0
          %283 = vst [vmem:[%s264 + $0x30] sm:$0xff] 0.0
          %284 = vst [vmem:[%s264 + $0x38] sm:$0xff] 0.0
        $region44: #{tpu_custom_call.1} parent=31 // pred_fallthru
          _
        %v285 = vld [vmem:[%s221] sm:$0xff]
        %v286 = vld [vmem:[%s221 + $0x8] sm:$0xff]
        %v287 = vld [vmem:[%s221 + $0x10] sm:$0xff]
        %v288 = vld [vmem:[%s221 + $0x18] sm:$0xff]
        %v289 = vld [vmem:[%s221 + $0x20] sm:$0xff]
        %v290 = vld [vmem:[%s221 + $0x28] sm:$0xff]
        %v291 = vld [vmem:[%s221 + $0x30] sm:$0xff]
        %v292 = vld [vmem:[%s221 + $0x38] sm:$0xff]
        %vm293 = vcmp.ne.f32.partialorder %v285, %v285
        %vm294 = vcmp.ne.f32.partialorder %v286, %v286
        %vm295 = vcmp.ne.f32.partialorder %v287, %v287
        %vm296 = vcmp.ne.f32.partialorder %v288, %v288
        %vm297 = vcmp.ne.f32.partialorder %v289, %v289
        %vm298 = vcmp.ne.f32.partialorder %v290, %v290
        %vm299 = vcmp.ne.f32.partialorder %v291, %v291
        %vm300 = vcmp.ne.f32.partialorder %v292, %v292
        %v301 = vsel %vm293, 0.0, %v285
        %v302 = vsel %vm294, 0.0, %v286
        %v303 = vsel %vm295, 0.0, %v287
        %v304 = vsel %vm296, 0.0, %v288
        %v305 = vsel %vm297, 0.0, %v289
        %v306 = vsel %vm298, 0.0, %v290
        %v307 = vsel %vm299, 0.0, %v291
        %v308 = vsel %vm300, 0.0, %v292
        %vm309 = vcmp.eq.f32.partialorder %v301, inf
        %vm310 = vcmp.eq.f32.partialorder %v302, inf
        %vm311 = vcmp.eq.f32.partialorder %v303, inf
        %vm312 = vcmp.eq.f32.partialorder %v304, inf
        %vm313 = vcmp.eq.f32.partialorder %v305, inf
        %vm314 = vcmp.eq.f32.partialorder %v306, inf
        %vm315 = vcmp.eq.f32.partialorder %v307, inf
        %vm316 = vcmp.eq.f32.partialorder %v308, inf
        %v317 = vsel %vm309, 3.4028235e+38, %v301
        %v318 = vsel %vm310, 3.4028235e+38, %v302
        %v319 = vsel %vm311, 3.4028235e+38, %v303
        %v320 = vsel %vm312, 3.4028235e+38, %v304
        %v321 = vsel %vm313, 3.4028235e+38, %v305
        %v322 = vsel %vm314, 3.4028235e+38, %v306
        %v323 = vsel %vm315, 3.4028235e+38, %v307
        %v324 = vsel %vm316, 3.4028235e+38, %v308
        %vm325 = vcmp.eq.f32.partialorder %v317, -inf
        %vm326 = vcmp.eq.f32.partialorder %v318, -inf
        %vm327 = vcmp.eq.f32.partialorder %v319, -inf
        %vm328 = vcmp.eq.f32.partialorder %v320, -inf
        %vm329 = vcmp.eq.f32.partialorder %v321, -inf
        %vm330 = vcmp.eq.f32.partialorder %v322, -inf
        %vm331 = vcmp.eq.f32.partialorder %v323, -inf
        %vm332 = vcmp.eq.f32.partialorder %v324, -inf
        %v333 = vsel %vm325, -3.4028235e+38, %v317
        %v334 = vsel %vm326, -3.4028235e+38, %v318
        %v335 = vsel %vm327, -3.4028235e+38, %v319
        %v336 = vsel %vm328, -3.4028235e+38, %v320
        %v337 = vsel %vm329, -3.4028235e+38, %v321
        %v338 = vsel %vm330, -3.4028235e+38, %v322
        %v339 = vsel %vm331, -3.4028235e+38, %v323
        %v340 = vsel %vm332, -3.4028235e+38, %v324
        %v341 = vld [vmem:[%s231] sm:$0xff]
        %v342 = vld [vmem:[%s231 + $0x8] sm:$0xff]
        %v343 = vld [vmem:[%s231 + $0x10] sm:$0xff]
        %v344 = vld [vmem:[%s231 + $0x18] sm:$0xff]
        %v345 = vld [vmem:[%s231 + $0x20] sm:$0xff]
        %v346 = vld [vmem:[%s231 + $0x28] sm:$0xff]
        %v347 = vld [vmem:[%s231 + $0x30] sm:$0xff]
        %v348 = vld [vmem:[%s231 + $0x38] sm:$0xff]
        %vm349 = vcmp.ne.f32.partialorder %v341, %v341
        %vm350 = vcmp.ne.f32.partialorder %v342, %v342
        %vm351 = vcmp.ne.f32.partialorder %v343, %v343
        %vm352 = vcmp.ne.f32.partialorder %v344, %v344
        %vm353 = vcmp.ne.f32.partialorder %v345, %v345
        %vm354 = vcmp.ne.f32.partialorder %v346, %v346
        %vm355 = vcmp.ne.f32.partialorder %v347, %v347
        %vm356 = vcmp.ne.f32.partialorder %v348, %v348
        %v357 = vsel %vm349, 0.0, %v341
        %v358 = vsel %vm350, 0.0, %v342
        %v359 = vsel %vm351, 0.0, %v343
        %v360 = vsel %vm352, 0.0, %v344
        %v361 = vsel %vm353, 0.0, %v345
        %v362 = vsel %vm354, 0.0, %v346
        %v363 = vsel %vm355, 0.0, %v347
        %v364 = vsel %vm356, 0.0, %v348
        %vm365 = vcmp.eq.f32.partialorder %v357, inf
        %vm366 = vcmp.eq.f32.partialorder %v358, inf
        %vm367 = vcmp.eq.f32.partialorder %v359, inf
        %vm368 = vcmp.eq.f32.partialorder %v360, inf
        %vm369 = vcmp.eq.f32.partialorder %v361, inf
        %vm370 = vcmp.eq.f32.partialorder %v362, inf
        %vm371 = vcmp.eq.f32.partialorder %v363, inf
        %vm372 = vcmp.eq.f32.partialorder %v364, inf
        %v373 = vsel %vm365, 3.4028235e+38, %v357
        %v374 = vsel %vm366, 3.4028235e+38, %v358
        %v375 = vsel %vm367, 3.4028235e+38, %v359
        %v376 = vsel %vm368, 3.4028235e+38, %v360
        %v377 = vsel %vm369, 3.4028235e+38, %v361
        %v378 = vsel %vm370, 3.4028235e+38, %v362
        %v379 = vsel %vm371, 3.4028235e+38, %v363
        %v380 = vsel %vm372, 3.4028235e+38, %v364
        %vm381 = vcmp.eq.f32.partialorder %v373, -inf
        %vm382 = vcmp.eq.f32.partialorder %v374, -inf
        %vm383 = vcmp.eq.f32.partialorder %v375, -inf
        %vm384 = vcmp.eq.f32.partialorder %v376, -inf
        %vm385 = vcmp.eq.f32.partialorder %v377, -inf
        %vm386 = vcmp.eq.f32.partialorder %v378, -inf
        %vm387 = vcmp.eq.f32.partialorder %v379, -inf
        %vm388 = vcmp.eq.f32.partialorder %v380, -inf
        %v389 = vsel %vm381, -3.4028235e+38, %v373
        %v390 = vsel %vm382, -3.4028235e+38, %v374
        %v391 = vsel %vm383, -3.4028235e+38, %v375
        %v392 = vsel %vm384, -3.4028235e+38, %v376
        %v393 = vsel %vm385, -3.4028235e+38, %v377
        %v394 = vsel %vm386, -3.4028235e+38, %v378
        %v395 = vsel %vm387, -3.4028235e+38, %v379
        %v396 = vsel %vm388, -3.4028235e+38, %v380
        %v397 = vsub.f32 %v389, %v333
        %v398 = vsub.f32 %v390, %v334
        %v399 = vsub.f32 %v391, %v335
        %v400 = vsub.f32 %v392, %v336
        %v401 = vsub.f32 %v393, %v337
        %v402 = vsub.f32 %v394, %v338
        %v403 = vsub.f32 %v395, %v339
        %v404 = vsub.f32 %v396, %v340
        %v405 = vmul.f32 %v397, %v397
        %v406 = vmul.f32 %v398, %v398
        %v407 = vmul.f32 %v399, %v399
        %v408 = vmul.f32 %v400, %v400
        %v409 = vmul.f32 %v401, %v401
        %v410 = vmul.f32 %v402, %v402
        %v411 = vmul.f32 %v403, %v403
        %v412 = vmul.f32 %v404, %v404
        %v413 = vlaneseq
        %v414 = vand.u32 %v413, 127
        %v415 = vadd.s32 %v414, 128
        %v416 = vadd.s32 %v414, 256
        %v417 = vadd.s32 %v414, 384
        %v418 = vadd.s32 %v414, 512
        %v419 = vadd.s32 %v414, 640
        %v420 = vadd.s32 %v414, 768
        %v421 = vadd.s32 %v414, 896
        %v422 = vld [vmem:[%s271] sm:$0xff]
        %423 = vset.pattern.permute.xlu0 0
        %424 = vperm.xlu0 %423, %v422
        %v425 = vpop.permute.xlu0 %424
        %vm426 = vcmp.lt.s32.totalorder %v414, %v425
        %vm427 = vcmp.lt.s32.totalorder %v415, %v425
        %vm428 = vcmp.lt.s32.totalorder %v416, %v425
        %vm429 = vcmp.lt.s32.totalorder %v417, %v425
        %vm430 = vcmp.lt.s32.totalorder %v418, %v425
        %vm431 = vcmp.lt.s32.totalorder %v419, %v425
        %vm432 = vcmp.lt.s32.totalorder %v420, %v425
        %vm433 = vcmp.lt.s32.totalorder %v421, %v425
        %v434 = vsub.f32 1.0, %v405
        %v435 = vsub.f32 1.0, %v406
        %v436 = vsub.f32 1.0, %v407
        %v437 = vsub.f32 1.0, %v408
        %v438 = vsub.f32 1.0, %v409
        %v439 = vsub.f32 1.0, %v410
        %v440 = vsub.f32 1.0, %v411
        %v441 = vsub.f32 1.0, %v412
        %v442 = vsel %vm426, %v434, %v405
        %v443 = vsel %vm427, %v435, %v406
        %v444 = vsel %vm428, %v436, %v407
        %v445 = vsel %vm429, %v437, %v408
        %v446 = vsel %vm430, %v438, %v409
        %v447 = vsel %vm431, %v439, %v410
        %v448 = vsel %vm432, %v440, %v411
        %v449 = vsel %vm433, %v441, %v412
        %v450 = vld [vmem:[%s264] sm:$0xff]
        %v451 = vld [vmem:[%s264 + $0x8] sm:$0xff]
        %v452 = vld [vmem:[%s264 + $0x10] sm:$0xff]
        %v453 = vld [vmem:[%s264 + $0x18] sm:$0xff]
        %v454 = vld [vmem:[%s264 + $0x20] sm:$0xff]
        %v455 = vld [vmem:[%s264 + $0x28] sm:$0xff]
        %v456 = vld [vmem:[%s264 + $0x30] sm:$0xff]
        %v457 = vld [vmem:[%s264 + $0x38] sm:$0xff]
        %v458 = vadd.f32 %v450, %v442
        %v459 = vadd.f32 %v451, %v443
        %v460 = vadd.f32 %v452, %v444
        %v461 = vadd.f32 %v453, %v445
        %v462 = vadd.f32 %v454, %v446
        %v463 = vadd.f32 %v455, %v447
        %v464 = vadd.f32 %v456, %v448
        %v465 = vadd.f32 %v457, %v449
        %466 = vst [vmem:[%s264] sm:$0xff] %v458
        %467 = vst [vmem:[%s264 + $0x8] sm:$0xff] %v459
        %468 = vst [vmem:[%s264 + $0x10] sm:$0xff] %v460
        %469 = vst [vmem:[%s264 + $0x18] sm:$0xff] %v461
        %470 = vst [vmem:[%s264 + $0x20] sm:$0xff] %v462
        %471 = vst [vmem:[%s264 + $0x28] sm:$0xff] %v463
        %472 = vst [vmem:[%s264 + $0x30] sm:$0xff] %v464
        %473 = vst [vmem:[%s264 + $0x38] sm:$0xff] %v465
        %s474 = sand.u32 %s127, 1
        %s475 = scalar_lea.sflag [#allocation4], %s474
        %s476 = sand.u32 %s127, 1
        %s477 = smul.addr %s476, 64
        %s478 = scalar_lea.vmem [#allocation7], %s477
        // Predicated region
        $region45: #{tpu_custom_call.1} parent=31 // pred_check
          %p479 = pneg %p137
        $region46: #{tpu_custom_call.1} parent=31 // pred_check_branch
          %481 = sbr.rel (%p479) target = $region48
        $region47: #{tpu_custom_call.1} parent=31 // pred_region
          %483 = vsyncadd %s475, 0
          %s484 = smul.addr %s27, 8
          %s485 = smul.addr %s484, 8
          %s486 = scalar_lea.hbm %s3, %s485
          %s488 = sshll.u32 %s478, 4
          %s489 = int_to_ptr.vmem [resolvable:$true] %s488
          %s490 = sshll.u32 %s486, 4
          %s491 = int_to_ptr.hbm [resolvable:$true] %s490
          %493 = dma.vmem_to_hbm [thread:$0]  %s489, 1024, %s491, %s475
        $region48: #{tpu_custom_call.1} parent=31 // pred_fallthru
          _
      $region32: #{tpu_custom_call.1} parent=5 // pred_fallthru
        _
      %p494 = scmp.le.s32.totalorder 2, %s18
      // Predicated region
      $region49: #{tpu_custom_call.1} parent=5 // pred_check
        %p495 = pneg %p494
      $region50: #{tpu_custom_call.1} parent=5 // pred_check_branch
        %497 = sbr.rel (%p495) target = $region52
      $region51: #{tpu_custom_call.1} parent=5 // pred_region
        %s498 = ssub.s32 %s18, 2
        // Predicated region
        $region53: #{tpu_custom_call.1} parent=51 // pred_check
          %p499 = pneg %p143
        $region54: #{tpu_custom_call.1} parent=51 // pred_check_branch
          %501 = sbr.rel (%p499) target = $region56
        $region55: #{tpu_custom_call.1} parent=51 // pred_region
          %s502 = sand.u32 %s128, 1
          %s503 = scalar_lea.sflag [#allocation4], %s502
          %s504 = sand.u32 %s128, 1
          %s505 = smul.addr %s504, 64
          %s506 = scalar_lea.vmem [#allocation7], %s505
          %508 = dma.done %s503, 1024
        $region56: #{tpu_custom_call.1} parent=51 // pred_fallthru
          _
      $region52: #{tpu_custom_call.1} parent=5 // pred_fallthru
        _
    $region6: #{tpu_custom_call.1} parent=1 // loop_footer
      %s22 = sadd.s32 1, %s18
    $region7: #{tpu_custom_call.1} parent=1 // loop_footer_branch
      %17 = sbr.rel target = $region3
    $region8: #{tpu_custom_call.1} parent=1 // loop_exit
      _
    %509 = vsyncpa [#allocation3], 1
    %s510 = scalar_lea.sflag [#allocation3], 1
    %511 = vsyncpa %s510, 1
    %512 = vsyncpa [#allocation6], 1
    %s513 = scalar_lea.sflag [#allocation6], 1
    %514 = vsyncpa %s513, 1
    %515 = vsyncpa [#allocation4], 1
    %s516 = scalar_lea.sflag [#allocation4], 1
    %517 = vsyncpa %s516, 1

</llo_original>
